<compile_context>
chip_gen: v6e
topology: v6e:2x2x1
jax: 0.10.0
libtpu: 0.0.40
codegen_flags: <defaults>
</compile_context>

<pallas_src>
import jax
import jax.numpy as jnp
import numpy as np
from jax import lax
from jax.experimental import pallas as pl
from jax.experimental.pallas import tpu as pltpu


def encoder_kernel(x_ref, w1_ref, w2_ref, o_ref):
    # x_ref : [1, N, s]   non-overlapping half-frames of the mixture
    # w1_ref: [H, s]      first half of the conv kernel  (weight[:, 0, :s])
    # w2_ref: [H, s]      second half of the conv kernel (weight[:, 0, s:])
    # o_ref : [1, H, K]   K = N - 1
    K = o_ref.shape[2]

    xa = x_ref[0, pl.ds(0, K), :]        # half-frames 0 .. K-1  -> [K, s]
    xb = x_ref[0, pl.ds(1, K), :]        # half-frames 1 .. K    -> [K, s]

    # out[h, k] = sum_t w1[h, t] * xa[k, t] + sum_t w2[h, t] * xb[k, t]
    dn = (((1,), (1,)), ((), ()))        # contract the length-s frame axis
    acc = lax.dot_general(w1_ref[...], xa, dn,
                          preferred_element_type=jnp.float32)
    acc += lax.dot_general(w2_ref[...], xb, dn,
                           preferred_element_type=jnp.float32)   # [H, K]
    o_ref[0] = jnp.maximum(acc, 0.0).astype(o_ref.dtype)         # fused ReLU


def encoder_forward(audio_mix, weight, kernel_size):
    """audio_mix: [B, 1, L] f32; weight: [H, 1, ks] (PyTorch Conv1d layout)."""
    B, C, L = audio_mix.shape
    assert C == 1
    H = weight.shape[0]
    ks = kernel_size
    s = ks // 2
    K = (L - ks) // s + 1                 # PyTorch Conv1d output length
    N = K + 1                             # half-frames actually consumed

    # Contiguous prefix + reshape: no HBM transpose / copy of the audio.
    x_half = audio_mix[:, 0, : N * s].reshape(B, N, s)
    w1 = weight[:, 0, :s]                 # [H, s], tiny
    w2 = weight[:, 0, s:]                 # [H, s], tiny

    return pl.pallas_call(
        encoder_kernel,
        grid=(B,),
        in_specs=[
            pl.BlockSpec((1, N, s), lambda b: (b, 0, 0)),
            pl.BlockSpec((H, s), lambda b: (0, 0)),
            pl.BlockSpec((H, s), lambda b: (0, 0)),
        ],
        out_specs=pl.BlockSpec((1, H, K), lambda b: (b, 0, 0)),
        out_shape=jax.ShapeDtypeStruct((B, H, K), jnp.float32),
        compiler_params=pltpu.CompilerParams(
            dimension_semantics=("parallel",)),
    )(x_half, w1, w2)


# ---------------- pure-JAX reference (PyTorch Conv1d + ReLU semantics) ------
def ref_encoder(audio_mix, weight, kernel_size):
    B, _, L = audio_mix.shape
    ks = kernel_size
    s = ks // 2
    K = (L - ks) // s + 1
    idx = (jnp.arange(K) * s)[:, None] + jnp.arange(ks)[None, :]   # [K, ks]
    frames = audio_mix[:, 0, :][:, idx]                            # [B, K, ks]
    emb = jnp.einsum("bkt,ht->bhk", frames, weight[:, 0, :],
                     precision=lax.Precision.HIGHEST)
    return jnp.maximum(emb, 0.0)


if __name__ == "__main__":
    B, H = 2, 32            # batch, hidden_encoder_dim
    ksize = 16              # kernel_size; stride = 8
    L = 1024                # small stand-in for audio_length * sample_rate

    key = jax.random.PRNGKey(0)
    k1, k2 = jax.random.split(key)
    audio_mix = jax.random.normal(k1, (B, 1, L), jnp.float32)
    # deterministic parameter init (synthetic, not a checkpoint load)
    weight = jax.random.normal(k2, (H, 1, ksize), jnp.float32) / np.sqrt(ksize)

    emb = encoder_forward(audio_mix, weight, ksize)
    emb = jax.block_until_ready(emb)

    ref = ref_encoder(audio_mix, weight, ksize)
    assert emb.shape == (B, H, (L - ksize) // (ksize // 2) + 1)
    np.testing.assert_allclose(np.asarray(emb), np.asarray(ref),
                               rtol=1e-4, atol=1e-4)

    print("KERNEL_OK")
</pallas_src>

<mosaic_0001>
module attributes {stable_mosaic.version = 11 : i64} {
  func.func @encoder_kernel(%arg0: i32, %arg1: memref<1x128x8xf32, #tpu.memory_space<vmem>>, %arg2: memref<32x8xf32, #tpu.memory_space<vmem>>, %arg3: memref<32x8xf32, #tpu.memory_space<vmem>>, %arg4: memref<1x32x127xf32, #tpu.memory_space<vmem>>) attributes {dimension_semantics = [#tpu.dimension_semantics<parallel>], iteration_bounds = array<i64: 2>, scalar_prefetch = 0 : i64, scratch_operands = 0 : i64, tpu.core_type = #tpu.core_type<tc>, window_params = [{transform_indices = @transform_0, window_bounds = array<i64: 1, 128, 8>}, {pipeline_mode = #tpu.pipeline_mode<synchronous>, transform_indices = @transform_1, window_bounds = array<i64: 32, 8>}, {pipeline_mode = #tpu.pipeline_mode<synchronous>, transform_indices = @transform_2, window_bounds = array<i64: 32, 8>}, {transform_indices = @transform_3, window_bounds = array<i64: 1, 32, 127>}]} {
    %c0 = arith.constant 0 : index
    %c0_0 = arith.constant 0 : index
    %c0_1 = arith.constant 0 : index
    %0 = vector.load %arg1[%c0, %c0_0, %c0_1] : memref<1x128x8xf32, #tpu.memory_space<vmem>>, vector<1x127x8xf32>
    %1 = vector.shape_cast %0 : vector<1x127x8xf32> to vector<127x8xf32>
    %c0_2 = arith.constant 0 : index
    %c1 = arith.constant 1 : index
    %c0_3 = arith.constant 0 : index
    %2 = vector.load %arg1[%c0_2, %c1, %c0_3] : memref<1x128x8xf32, #tpu.memory_space<vmem>>, vector<1x127x8xf32>
    %3 = vector.shape_cast %2 : vector<1x127x8xf32> to vector<127x8xf32>
    %c0_4 = arith.constant 0 : index
    %c0_5 = arith.constant 0 : index
    %4 = vector.load %arg2[%c0_4, %c0_5] : memref<32x8xf32, #tpu.memory_space<vmem>>, vector<32x8xf32>
    %cst = arith.constant dense<0.000000e+00> : vector<32x127xf32>
    %5 = tpu.matmul %4, %1, %cst {dimension_numbers = #tpu.dot_dimension_numbers<[1], [1], [0], [0], [0, 0, 1, 0], [], []>} : vector<32x8xf32>, vector<127x8xf32>, vector<32x127xf32> -> vector<32x127xf32>
    %c0_6 = arith.constant 0 : index
    %c0_7 = arith.constant 0 : index
    %6 = vector.load %arg3[%c0_6, %c0_7] : memref<32x8xf32, #tpu.memory_space<vmem>>, vector<32x8xf32>
    %cst_8 = arith.constant dense<0.000000e+00> : vector<32x127xf32>
    %7 = tpu.matmul %6, %3, %cst_8 {dimension_numbers = #tpu.dot_dimension_numbers<[1], [1], [0], [0], [0, 0, 1, 0], [], []>} : vector<32x8xf32>, vector<127x8xf32>, vector<32x127xf32> -> vector<32x127xf32>
    %8 = arith.addf %5, %7 : vector<32x127xf32>
    %cst_9 = arith.constant 0.000000e+00 : f32
    %9 = vector.broadcast %cst_9 : f32 to vector<32x127xf32>
    %10 = arith.maximumf %8, %9 : vector<32x127xf32>
    %c0_10 = arith.constant 0 : index
    %c0_11 = arith.constant 0 : index
    %c0_12 = arith.constant 0 : index
    %11 = vector.load %arg4[%c0_10, %c0_11, %c0_12] : memref<1x32x127xf32, #tpu.memory_space<vmem>>, vector<1x32x127xf32>
    %12 = vector.shape_cast %11 : vector<1x32x127xf32> to vector<32x127xf32>
    %13 = vector.shape_cast %10 : vector<32x127xf32> to vector<1x32x127xf32>
    tpu.vector_store %arg4[%c0_10, %c0_11, %c0_12], %13 {strides = array<i32>} : memref<1x32x127xf32, #tpu.memory_space<vmem>>, vector<1x32x127xf32>,
    return
  }
  func.func @transform_0(%arg0: i32) -> (i32, i32, i32) {
    %c0_i32 = arith.constant 0 : i32
    %c0_i32_0 = arith.constant 0 : i32
    %c0_i32_1 = arith.constant 0 : i32
    return %arg0, %c0_i32, %c0_i32_0 : i32, i32, i32
  }
  func.func @transform_1(%arg0: i32) -> (i32, i32) {
    %c0_i32 = arith.constant 0 : i32
    %c0_i32_0 = arith.constant 0 : i32
    %c0_i32_1 = arith.constant 0 : i32
    return %c0_i32, %c0_i32_0 : i32, i32
  }
  func.func @transform_2(%arg0: i32) -> (i32, i32) {
    %c0_i32 = arith.constant 0 : i32
    %c0_i32_0 = arith.constant 0 : i32
    %c0_i32_1 = arith.constant 0 : i32
    return %c0_i32, %c0_i32_0 : i32, i32
  }
  func.func @transform_3(%arg0: i32) -> (i32, i32, i32) {
    %c0_i32 = arith.constant 0 : i32
    %c0_i32_0 = arith.constant 0 : i32
    %c0_i32_1 = arith.constant 0 : i32
    return %arg0, %c0_i32, %c0_i32_0 : i32, i32, i32
  }
}

</mosaic_0001>

<llo_original>
// kernel: tpu_custom_call.1
$region0: #{tpu_custom_call.1}
  #allocation0 [shape = 'u32[]', space=smem, size = 0x4, offset = 0x4, fixed_abs, tag = 'smem constant byte address 0x4 - core index']
  #allocation1 [shape = 'u32[144,128]{1,0:T(1,128)}', space=vmem, size = 0x12000, scoped, tag = 'internal scratch']
  %s0 = inlined_call_operand.vmem [shape: f32[2,128,8], index: 0, kind: input, shape index: {}]
  %s1 = inlined_call_operand.vmem [shape: f32[32,8], index: 1, kind: input, shape index: {}]
  %s2 = inlined_call_operand.vmem [shape: f32[32,8], index: 2, kind: input, shape index: {}]
  %s3 = inlined_call_operand.hbm [shape: f32[2,32,127], index: 3, kind: output, shape index: {}]
  %s4 = sld [smem:[#allocation0]]
  $region45: #{tpu_custom_call.1} parent=0
    _
  %s6 = ssub.s32 1, %s4
  %s7 = scalar_select 0, %s6, %s4
  $region1: #{tpu_custom_call.1} parent=0
    #allocation2 [shape = 'u8[32768]{0}', space=vmem, size = 0x8000, scoped, tag = 'output window, operand 0']
    #allocation3 [shape = 's32[2]{0}', space=sflag, size = 0x8, scoped, tag = 'scoped memory for tpu_custom_call.1']
    %8 = vsyncpa [#allocation3], 0
    %s9 = scalar_lea.sflag [#allocation3], 1
    %10 = vsyncpa %s9, 0
    loop: start=0, step=1, limit=4
    $region2: #{tpu_custom_call.1} parent=1 // loop_pre_header
      _
    $region3: #{tpu_custom_call.1} parent=1 // loop_header
      %s12 = sphi 0, %s16
      %p13 = scmp.ge.s32.totalorder %s12, 4
      %s22 = sphi 0, %s24
      %s25 = sphi 0, %s22
      %s26 = sphi 0, %s25
      %s42 = sphi 0, %s26
      %s46 = sphi 0, %s46
      %s48 = sphi 0, %s46
      %s49 = sphi 0, %s48
      %s63 = sphi 0, %s49
      %s67 = sphi 0, %s67
      %s69 = sphi 0, %s67
      %s70 = sphi 0, %s69
      %s84 = sphi 0, %s70
      %s90 = sphi 0, %s92
      %s93 = sphi 0, %s90
      %s94 = sphi 0, %s93
      %s110 = sphi 0, %s94
    $region4: #{tpu_custom_call.1} parent=1 // loop_header_branch
      %15 = sbr.rel (%p13) target = $region8
    $region5: #{tpu_custom_call.1} parent=1 // loop_body
      %s17 = ssub.s32 %s12, 1
      %s18 = ssub.s32 %s12, 2
      %s19 = sadd.s32 %s12, 1
      %s20 = ssub.s32 %s12, %s19
      %p21 = scmp.eq.s32.totalorder %s20, 0
      %s23 = sadd.s32 %s22, 1
      %s24 = scalar_select %p21, %s22, %s23
      %p27 = pneg %p21
      %p28 = scmp.eq.s32.totalorder %s12, 1
      %p29 = por %p27, %p28
      %p30 = scmp.ne.s32.totalorder %s22, %s25
      %p31 = scmp.eq.s32.totalorder %s12, 0
      %p32 = por %p30, %p31
      %p33 = scmp.ne.s32.totalorder %s22, %s25
      %p34 = scmp.eq.s32.totalorder %s17, 1
      %p35 = por %p33, %p34
      %p36 = scmp.ne.s32.totalorder %s25, %s26
      %p37 = scmp.eq.s32.totalorder %s17, 0
      %p38 = por %p36, %p37
      %p39 = scmp.ne.s32.totalorder %s25, %s26
      %p40 = scmp.eq.s32.totalorder %s18, 1
      %p41 = por %p39, %p40
      %p43 = scmp.ne.s32.totalorder %s26, %s42
      %p44 = scmp.eq.s32.totalorder %s18, 0
      %p45 = por %p43, %p44
      %s47 = sadd.s32 %s46, 1
      %p50 = scmp.eq.s32.totalorder %s12, 1
      %p51 = scmp.ne.s32.totalorder %s46, %s48
      %p52 = scmp.eq.s32.totalorder %s12, 0
      %p53 = por %p51, %p52
      %p54 = scmp.ne.s32.totalorder %s46, %s48
      %p55 = scmp.eq.s32.totalorder %s17, 1
      %p56 = por %p54, %p55
      %p57 = scmp.ne.s32.totalorder %s48, %s49
      %p58 = scmp.eq.s32.totalorder %s17, 0
      %p59 = por %p57, %p58
      %p60 = scmp.ne.s32.totalorder %s48, %s49
      %p61 = scmp.eq.s32.totalorder %s18, 1
      %p62 = por %p60, %p61
      %p64 = scmp.ne.s32.totalorder %s49, %s63
      %p65 = scmp.eq.s32.totalorder %s18, 0
      %p66 = por %p64, %p65
      %s68 = sadd.s32 %s67, 1
      %p71 = scmp.eq.s32.totalorder %s12, 1
      %p72 = scmp.ne.s32.totalorder %s67, %s69
      %p73 = scmp.eq.s32.totalorder %s12, 0
      %p74 = por %p72, %p73
      %p75 = scmp.ne.s32.totalorder %s67, %s69
      %p76 = scmp.eq.s32.totalorder %s17, 1
      %p77 = por %p75, %p76
      %p78 = scmp.ne.s32.totalorder %s69, %s70
      %p79 = scmp.eq.s32.totalorder %s17, 0
      %p80 = por %p78, %p79
      %p81 = scmp.ne.s32.totalorder %s69, %s70
      %p82 = scmp.eq.s32.totalorder %s18, 1
      %p83 = por %p81, %p82
      %p85 = scmp.ne.s32.totalorder %s70, %s84
      %p86 = scmp.eq.s32.totalorder %s18, 0
      %p87 = por %p85, %p86
      %s88 = ssub.s32 %s12, %s19
      %p89 = scmp.eq.s32.totalorder %s88, 0
      %s91 = sadd.s32 %s90, 1
      %s92 = scalar_select %p89, %s90, %s91
      %p95 = pneg %p89
      %p96 = scmp.eq.s32.totalorder %s12, 1
      %p97 = por %p95, %p96
      %p98 = scmp.ne.s32.totalorder %s90, %s93
      %p99 = scmp.eq.s32.totalorder %s12, 0
      %p100 = por %p98, %p99
      %p101 = scmp.ne.s32.totalorder %s90, %s93
      %p102 = scmp.eq.s32.totalorder %s17, 1
      %p103 = por %p101, %p102
      %p104 = scmp.ne.s32.totalorder %s93, %s94
      %p105 = scmp.eq.s32.totalorder %s17, 0
      %p106 = por %p104, %p105
      %p107 = scmp.ne.s32.totalorder %s93, %s94
      %p108 = scmp.eq.s32.totalorder %s18, 1
      %p109 = por %p107, %p108
      %p111 = scmp.ne.s32.totalorder %s94, %s110
      %p112 = scmp.eq.s32.totalorder %s18, 0
      %p113 = por %p111, %p112
      %p114 = scmp.le.s32.totalorder 1, %s12
      %p115 = scmp.lt.s32.totalorder %s12, 3
      %p116 = pnand %p114, %p115
      %p117 = pneg %p116
      // Predicated region
      $region9: #{tpu_custom_call.1} parent=5 // pred_check
        _
      $region10: #{tpu_custom_call.1} parent=5 // pred_check_branch
        %119 = sbr.rel (%p116) target = $region12
      $region11: #{tpu_custom_call.1} parent=5 // pred_region
        %s120 = ssub.s32 %s12, 1
        // Predicated region
        $region13: #{tpu_custom_call.1} parent=11 // pred_check
          %p121 = pneg %p59
        $region14: #{tpu_custom_call.1} parent=11 // pred_check_branch
          %123 = sbr.rel (%p121) target = $region16
        $region15: #{tpu_custom_call.1} parent=11 // pred_region
          _
        $region16: #{tpu_custom_call.1} parent=11 // pred_fallthru
          _
        // Predicated region
        $region17: #{tpu_custom_call.1} parent=11 // pred_check
          %p124 = pneg %p80
        $region18: #{tpu_custom_call.1} parent=11 // pred_check_branch
          %126 = sbr.rel (%p124) target = $region20
        $region19: #{tpu_custom_call.1} parent=11 // pred_region
          _
        $region20: #{tpu_custom_call.1} parent=11 // pred_fallthru
          _
      $region12: #{tpu_custom_call.1} parent=5 // pred_fallthru
        _
      %p127 = scmp.lt.s32.totalorder %s12, 2
      // Predicated region
      $region21: #{tpu_custom_call.1} parent=5 // pred_check
        %p128 = pneg %p127
      $region22: #{tpu_custom_call.1} parent=5 // pred_check_branch
        %130 = sbr.rel (%p128) target = $region24
      $region23: #{tpu_custom_call.1} parent=5 // pred_region
        // Predicated region
        $region25: #{tpu_custom_call.1} parent=23 // pred_check
          %p131 = pneg %p32
        $region26: #{tpu_custom_call.1} parent=23 // pred_check_branch
          %133 = sbr.rel (%p131) target = $region28
        $region27: #{tpu_custom_call.1} parent=23 // pred_region
          %p134 = scmp.lt.s32.totalorder %s12, 1
          %s135 = scalar_select %p134, %s12, 1
          %s136 = smul.addr %s135, 16
          %s137 = smul.addr %s136, 8
          %s138 = scalar_lea.vmem %s0, %s137
        $region28: #{tpu_custom_call.1} parent=23 // pred_fallthru
          _
      $region24: #{tpu_custom_call.1} parent=5 // pred_fallthru
        _
      %p139 = scmp.le.s32.totalorder 1, %s12
      %p140 = scmp.lt.s32.totalorder %s12, 3
      %p141 = pnand %p139, %p140
      %p142 = pneg %p141
      // Predicated region
      $region29: #{tpu_custom_call.1} parent=5 // pred_check
        _
      $region30: #{tpu_custom_call.1} parent=5 // pred_check_branch
        %144 = sbr.rel (%p141) target = $region32
      $region31: #{tpu_custom_call.1} parent=5 // pred_region
        %s145 = ssub.s32 %s12, 1
        %p146 = scmp.lt.s32.totalorder %s17, 1
        %s147 = scalar_select %p146, %s17, 1
        %s148 = smul.addr %s147, 16
        %s149 = smul.addr %s148, 8
        %s150 = scalar_lea.vmem %s0, %s149
        %p151 = pneg %p38
        %p152 = pneg %p35
        %p153 = pneg %p59
        %p154 = pneg %p56
        %p155 = pneg %p80
        %p156 = pneg %p77
        %p157 = pneg %p106
        %p158 = pneg %p103
        %s159 = sand.u32 %s93, 1
        %s160 = scalar_lea.sflag [#allocation3], %s159
        %s161 = sand.u32 %s93, 1
        %s162 = smul.addr %s161, 32
        %s163 = scalar_lea.vmem [#allocation2], %s162
        %p164 = scmp.lt.s32.totalorder %s17, 1
        %s165 = scalar_select %p164, %s17, 1
        %s166 = smul.addr %s165, 16
        %s167 = smul.addr %s166, 8
        %s168 = scalar_lea.vmem %s0, %s167
        %v169 = vld [vmem:[%s168] sm:$0xff]
        %v170 = vld [vmem:[%s168 + $0x8] sm:$0xff]
        %v171 = vld [vmem:[%s168 + $0x10] sm:$0xff]
        %v172 = vld [vmem:[%s168 + $0x18] sm:$0xff]
        %v173 = vld [vmem:[%s168 + $0x20] sm:$0xff]
        %v174 = vld [vmem:[%s168 + $0x28] sm:$0xff]
        %v175 = vld [vmem:[%s168 + $0x30] sm:$0xff]
        %v176 = vld [vmem:[%s168 + $0x38] sm:$0xff]
        %v177 = vld [vmem:[%s168 + $0x40] sm:$0xff]
        %v178 = vld [vmem:[%s168 + $0x48] sm:$0xff]
        %v179 = vld [vmem:[%s168 + $0x50] sm:$0xff]
        %v180 = vld [vmem:[%s168 + $0x58] sm:$0xff]
        %v181 = vld [vmem:[%s168 + $0x60] sm:$0xff]
        %v182 = vld [vmem:[%s168 + $0x68] sm:$0xff]
        %v183 = vld [vmem:[%s168 + $0x70] sm:$0xff]
        %v184 = vld [vmem:[%s168 + $0x78] sm:$0x7f]
        %v185 = vld [vmem:[%s168 + $0x1] sm:$0xff]
        %v186 = vld [vmem:[%s168 + $0x9] sm:$0xff]
        %v187 = vld [vmem:[%s168 + $0x11] sm:$0xff]
        %v188 = vld [vmem:[%s168 + $0x19] sm:$0xff]
        %v189 = vld [vmem:[%s168 + $0x21] sm:$0xff]
        %v190 = vld [vmem:[%s168 + $0x29] sm:$0xff]
        %v191 = vld [vmem:[%s168 + $0x31] sm:$0xff]
        %v192 = vld [vmem:[%s168 + $0x39] sm:$0xff]
        %v193 = vld [vmem:[%s168 + $0x41] sm:$0xff]
        %v194 = vld [vmem:[%s168 + $0x49] sm:$0xff]
        %v195 = vld [vmem:[%s168 + $0x51] sm:$0xff]
        %v196 = vld [vmem:[%s168 + $0x59] sm:$0xff]
        %v197 = vld [vmem:[%s168 + $0x61] sm:$0xff]
        %v198 = vld [vmem:[%s168 + $0x69] sm:$0xff]
        %v199 = vld [vmem:[%s168 + $0x71] sm:$0xff]
        %v200 = vld [vmem:[%s168 + $0x79] sm:$0x7f]
        %v201 = vld [vmem:[%s1] sm:$0xff]
        %v202 = vld [vmem:[%s1 + $0x8] sm:$0xff]
        %v203 = vld [vmem:[%s1 + $0x10] sm:$0xff]
        %v204 = vld [vmem:[%s1 + $0x18] sm:$0xff]
        %v205 = vld [vmem:[%s2] sm:$0xff]
        %v206 = vld [vmem:[%s2 + $0x8] sm:$0xff]
        %v207 = vld [vmem:[%s2 + $0x10] sm:$0xff]
        %v208 = vld [vmem:[%s2 + $0x18] sm:$0xff]
        %vm209 = vcmask 64512
        %v211 = vsel %vm209, %v205, 0
        %v214 = vsel %vm209, %v206, 0
        %v217 = vsel %vm209, %v207, 0
        %v220 = vsel %vm209, %v208, 0
        %v223 = vsel %vm209, %v185, 0
        %v226 = vsel %vm209, %v186, 0
        %v229 = vsel %vm209, %v187, 0
        %v232 = vsel %vm209, %v188, 0
        %v235 = vsel %vm209, %v189, 0
        %v238 = vsel %vm209, %v190, 0
        %v241 = vsel %vm209, %v191, 0
        %v244 = vsel %vm209, %v192, 0
        %v247 = vsel %vm209, %v193, 0
        %v250 = vsel %vm209, %v194, 0
        %v253 = vsel %vm209, %v195, 0
        %v256 = vsel %vm209, %v196, 0
        %v259 = vsel %vm209, %v197, 0
        %v262 = vsel %vm209, %v198, 0
        %v265 = vsel %vm209, %v199, 0
        %v268 = vsel %vm209, %v200, 0
        %270 = vmatprep.subr.mxu0 0.0
        %271 = vmatpush1.xpose.msra.mxu0 %v268
        %272 = vmatprep.subr.mxu0 0.0
        %273 = vmatpush1.xpose.msra.mxu0 %v265
        %274 = vmatprep.subr.mxu0 0.0
        %275 = vmatpush1.xpose.msra.mxu0 %v262
        %276 = vmatprep.subr.mxu0 0.0
        %277 = vmatpush1.xpose.msra.mxu0 %v259
        %278 = vmatprep.subr.mxu0 0.0
        %279 = vmatpush1.xpose.msra.mxu0 %v256
        %280 = vmatprep.subr.mxu0 0.0
        %281 = vmatpush1.xpose.msra.mxu0 %v253
        %282 = vmatprep.subr.mxu0 0.0
        %283 = vmatpush1.xpose.msra.mxu0 %v250
        %284 = vmatprep.subr.mxu0 0.0
        %285 = vmatpush1.xpose.msra.mxu0 %v247
        %286 = vmatprep.subr.mxu0 0.0
        %287 = vmatpush1.xpose.msra.mxu0 %v244
        %288 = vmatprep.subr.mxu0 0.0
        %289 = vmatpush1.xpose.msra.mxu0 %v241
        %290 = vmatprep.subr.mxu0 0.0
        %291 = vmatpush1.xpose.msra.mxu0 %v238
        %292 = vmatprep.subr.mxu0 0.0
        %293 = vmatpush1.xpose.msra.mxu0 %v235
        %294 = vmatprep.subr.mxu0 0.0
        %295 = vmatpush1.xpose.msra.mxu0 %v232
        %296 = vmatprep.subr.mxu0 0.0
        %297 = vmatpush1.xpose.msra.mxu0 %v229
        %298 = vmatprep.subr.mxu0 0.0
        %299 = vmatpush1.xpose.msra.mxu0 %v226
        %300 = vmatprep.subr.mxu0 0.0
        %301 = vmatpush1.xpose.msra.mxu0 %v223
        %302 = vmatprep.subr.mxu0 0.0
        %303 = vmatpush2.xpose.msra.mxu0 0.0
        %304 = vmatprep.subr.mxu0 0.0
        %305 = vmatpush2.xpose.msra.mxu0 0.0
        %306 = vmatprep.subr.mxu0 0.0
        %307 = vmatpush2.xpose.msra.mxu0 0.0
        %308 = vmatprep.subr.mxu0 0.0
        %309 = vmatpush2.xpose.msra.mxu0 0.0
        %310 = vmatprep.subr.mxu0 0.0
        %311 = vmatpush2.xpose.msra.mxu0 0.0
        %312 = vmatprep.subr.mxu0 0.0
        %313 = vmatpush2.xpose.msra.mxu0 0.0
        %314 = vmatprep.subr.mxu0 0.0
        %315 = vmatpush2.xpose.msra.mxu0 0.0
        %316 = vmatprep.subr.mxu0 0.0
        %317 = vmatpush2.xpose.msra.mxu0 0.0
        %318 = vmatprep.subr.mxu0 0.0
        %319 = vmatpush2.xpose.msra.mxu0 0.0
        %320 = vmatprep.subr.mxu0 0.0
        %321 = vmatpush2.xpose.msra.mxu0 0.0
        %322 = vmatprep.subr.mxu0 0.0
        %323 = vmatpush2.xpose.msra.mxu0 0.0
        %324 = vmatprep.subr.mxu0 0.0
        %325 = vmatpush2.xpose.msra.mxu0 0.0
        %326 = vmatprep.subr.mxu0 0.0
        %327 = vmatpush2.xpose.msra.mxu0 0.0
        %328 = vmatprep.subr.mxu0 0.0
        %329 = vmatpush2.xpose.msra.mxu0 0.0
        %330 = vmatprep.subr.mxu0 0.0
        %331 = vmatpush2.xpose.msra.mxu0 0.0
        %332 = vmatprep.subr.mxu0 0.0
        %333 = vmatpush2.xpose.msra.mxu0 0.0
        %334 = vmatprep.mubr.f32.mxu0 0.0
        %335 = vmatmul.mubr.f32.gmra.mxu0 %v211
        %v336 = vpop.f32.mrf.mxu0
        %v337 = vadd.f32 0.0, %v336
        %v338 = vpop.f32.mrf.mxu0
        %339 = vmatprep.mubr.f32.mxu0 0.0
        %340 = vmatmul.mubr.f32.gmra.mxu0 %v214
        %v341 = vpop.f32.mrf.mxu0
        %v342 = vadd.f32 0.0, %v341
        %v343 = vpop.f32.mrf.mxu0
        %344 = vmatprep.mubr.f32.mxu0 0.0
        %345 = vmatmul.mubr.f32.gmra.mxu0 %v217
        %v346 = vpop.f32.mrf.mxu0
        %v347 = vadd.f32 0.0, %v346
        %v348 = vpop.f32.mrf.mxu0
        %349 = vmatprep.mubr.f32.mxu0 0.0
        %350 = vmatmul.mubr.f32.gmra.mxu0 %v220
        %v351 = vpop.f32.mrf.mxu0
        %v352 = vadd.f32 0.0, %v351
        %v353 = vpop.f32.mrf.mxu0
        %354 = vdwg.mxu0
        %v356 = vsel %vm209, %v201, 0
        %v359 = vsel %vm209, %v202, 0
        %v362 = vsel %vm209, %v203, 0
        %v365 = vsel %vm209, %v204, 0
        %v368 = vsel %vm209, %v169, 0
        %v371 = vsel %vm209, %v170, 0
        %v374 = vsel %vm209, %v171, 0
        %v377 = vsel %vm209, %v172, 0
        %v380 = vsel %vm209, %v173, 0
        %v383 = vsel %vm209, %v174, 0
        %v386 = vsel %vm209, %v175, 0
        %v389 = vsel %vm209, %v176, 0
        %v392 = vsel %vm209, %v177, 0
        %v395 = vsel %vm209, %v178, 0
        %v398 = vsel %vm209, %v179, 0
        %v401 = vsel %vm209, %v180, 0
        %v404 = vsel %vm209, %v181, 0
        %v407 = vsel %vm209, %v182, 0
        %v410 = vsel %vm209, %v183, 0
        %v413 = vsel %vm209, %v184, 0
        %415 = vmatprep.subr.mxu0 0.0
        %416 = vmatpush1.xpose.msra.mxu0 %v413
        %417 = vmatprep.subr.mxu0 0.0
        %418 = vmatpush1.xpose.msra.mxu0 %v410
        %419 = vmatprep.subr.mxu0 0.0
        %420 = vmatpush1.xpose.msra.mxu0 %v407
        %421 = vmatprep.subr.mxu0 0.0
        %422 = vmatpush1.xpose.msra.mxu0 %v404
        %423 = vmatprep.subr.mxu0 0.0
        %424 = vmatpush1.xpose.msra.mxu0 %v401
        %425 = vmatprep.subr.mxu0 0.0
        %426 = vmatpush1.xpose.msra.mxu0 %v398
        %427 = vmatprep.subr.mxu0 0.0
        %428 = vmatpush1.xpose.msra.mxu0 %v395
        %429 = vmatprep.subr.mxu0 0.0
        %430 = vmatpush1.xpose.msra.mxu0 %v392
        %431 = vmatprep.subr.mxu0 0.0
        %432 = vmatpush1.xpose.msra.mxu0 %v389
        %433 = vmatprep.subr.mxu0 0.0
        %434 = vmatpush1.xpose.msra.mxu0 %v386
        %435 = vmatprep.subr.mxu0 0.0
        %436 = vmatpush1.xpose.msra.mxu0 %v383
        %437 = vmatprep.subr.mxu0 0.0
        %438 = vmatpush1.xpose.msra.mxu0 %v380
        %439 = vmatprep.subr.mxu0 0.0
        %440 = vmatpush1.xpose.msra.mxu0 %v377
        %441 = vmatprep.subr.mxu0 0.0
        %442 = vmatpush1.xpose.msra.mxu0 %v374
        %443 = vmatprep.subr.mxu0 0.0
        %444 = vmatpush1.xpose.msra.mxu0 %v371
        %445 = vmatprep.subr.mxu0 0.0
        %446 = vmatpush1.xpose.msra.mxu0 %v368
        %447 = vmatprep.subr.mxu0 0.0
        %448 = vmatpush2.xpose.msra.mxu0 0.0
        %449 = vmatprep.subr.mxu0 0.0
        %450 = vmatpush2.xpose.msra.mxu0 0.0
        %451 = vmatprep.subr.mxu0 0.0
        %452 = vmatpush2.xpose.msra.mxu0 0.0
        %453 = vmatprep.subr.mxu0 0.0
        %454 = vmatpush2.xpose.msra.mxu0 0.0
        %455 = vmatprep.subr.mxu0 0.0
        %456 = vmatpush2.xpose.msra.mxu0 0.0
        %457 = vmatprep.subr.mxu0 0.0
        %458 = vmatpush2.xpose.msra.mxu0 0.0
        %459 = vmatprep.subr.mxu0 0.0
        %460 = vmatpush2.xpose.msra.mxu0 0.0
        %461 = vmatprep.subr.mxu0 0.0
        %462 = vmatpush2.xpose.msra.mxu0 0.0
        %463 = vmatprep.subr.mxu0 0.0
        %464 = vmatpush2.xpose.msra.mxu0 0.0
        %465 = vmatprep.subr.mxu0 0.0
        %466 = vmatpush2.xpose.msra.mxu0 0.0
        %467 = vmatprep.subr.mxu0 0.0
        %468 = vmatpush2.xpose.msra.mxu0 0.0
        %469 = vmatprep.subr.mxu0 0.0
        %470 = vmatpush2.xpose.msra.mxu0 0.0
        %471 = vmatprep.subr.mxu0 0.0
        %472 = vmatpush2.xpose.msra.mxu0 0.0
        %473 = vmatprep.subr.mxu0 0.0
        %474 = vmatpush2.xpose.msra.mxu0 0.0
        %475 = vmatprep.subr.mxu0 0.0
        %476 = vmatpush2.xpose.msra.mxu0 0.0
        %477 = vmatprep.subr.mxu0 0.0
        %478 = vmatpush2.xpose.msra.mxu0 0.0
        %479 = vmatprep.mubr.f32.mxu0 0.0
        %480 = vmatmul.mubr.f32.gmra.mxu0 %v356
        %v481 = vpop.f32.mrf.mxu0
        %v482 = vadd.f32 %v337, %v481
        %v483 = vpop.f32.mrf.mxu0
        %484 = vmatprep.mubr.f32.mxu0 0.0
        %485 = vmatmul.mubr.f32.gmra.mxu0 %v359
        %v486 = vpop.f32.mrf.mxu0
        %v487 = vadd.f32 %v342, %v486
        %v488 = vpop.f32.mrf.mxu0
        %489 = vmatprep.mubr.f32.mxu0 0.0
        %490 = vmatmul.mubr.f32.gmra.mxu0 %v362
        %v491 = vpop.f32.mrf.mxu0
        %v492 = vadd.f32 %v347, %v491
        %v493 = vpop.f32.mrf.mxu0
        %494 = vmatprep.mubr.f32.mxu0 0.0
        %495 = vmatmul.mubr.f32.gmra.mxu0 %v365
        %v496 = vpop.f32.mrf.mxu0
        %v497 = vadd.f32 %v352, %v496
        %v498 = vpop.f32.mrf.mxu0
        %499 = vdwg.mxu0
        %v500 = vmax.f32 %v482, 0.0
        %v501 = vmax.f32 %v487, 0.0
        %v502 = vmax.f32 %v492, 0.0
        %v503 = vmax.f32 %v497, 0.0
        %vm504 = vcmask 1039360
        %505 = vst.msk [vmem:[%s163] sm:$0xff] %vm504, %v500
        %506 = vst.msk [vmem:[%s163 + $0x8] sm:$0xff] %vm504, %v501
        %507 = vst.msk [vmem:[%s163 + $0x10] sm:$0xff] %vm504, %v502
        %508 = vst.msk [vmem:[%s163 + $0x18] sm:$0xff] %vm504, %v503
        %s509 = sand.u32 %s93, 1
        %s510 = scalar_lea.sflag [#allocation3], %s509
        %s511 = sand.u32 %s93, 1
        %s512 = smul.addr %s511, 32
        %s513 = scalar_lea.vmem [#allocation2], %s512
        // Predicated region
        $region33: #{tpu_custom_call.1} parent=31 // pred_check
          %p514 = pneg %p103
        $region34: #{tpu_custom_call.1} parent=31 // pred_check_branch
          %516 = sbr.rel (%p514) target = $region36
        $region35: #{tpu_custom_call.1} parent=31 // pred_region
          %s518 = ssub.s32 512, 512
          %519 = vsyncadd %s510, %s518
          %s520 = smul.addr %s17, 4
          %s521 = smul.addr %s520, 128
          %s522 = scalar_lea.hbm %s3, %s521
          %s523 = sshll.u32 %s513, 4
          %s524 = int_to_ptr.vmem [resolvable:$true] %s523
          %529 = dma.vmem_to_hbm [thread:$0]  %s524, 512, %s522, %s510, 128, 128, 8
        $region36: #{tpu_custom_call.1} parent=31 // pred_fallthru
          _
      $region32: #{tpu_custom_call.1} parent=5 // pred_fallthru
        _
      %p530 = scmp.le.s32.totalorder 2, %s12
      // Predicated region
      $region37: #{tpu_custom_call.1} parent=5 // pred_check
        %p531 = pneg %p530
      $region38: #{tpu_custom_call.1} parent=5 // pred_check_branch
        %533 = sbr.rel (%p531) target = $region40
      $region39: #{tpu_custom_call.1} parent=5 // pred_region
        %s534 = ssub.s32 %s12, 2
        // Predicated region
        $region41: #{tpu_custom_call.1} parent=39 // pred_check
          %p535 = pneg %p109
        $region42: #{tpu_custom_call.1} parent=39 // pred_check_branch
          %537 = sbr.rel (%p535) target = $region44
        $region43: #{tpu_custom_call.1} parent=39 // pred_region
          %s538 = sand.u32 %s94, 1
          %s539 = scalar_lea.sflag [#allocation3], %s538
          %s540 = sand.u32 %s94, 1
          %s541 = smul.addr %s540, 32
          %s542 = scalar_lea.vmem [#allocation2], %s541
          %543 = dma.done %s539, 512
        $region44: #{tpu_custom_call.1} parent=39 // pred_fallthru
          _
      $region40: #{tpu_custom_call.1} parent=5 // pred_fallthru
        _
    $region6: #{tpu_custom_call.1} parent=1 // loop_footer
      %s16 = sadd.s32 1, %s12
    $region7: #{tpu_custom_call.1} parent=1 // loop_footer_branch
      %11 = sbr.rel target = $region3
    $region8: #{tpu_custom_call.1} parent=1 // loop_exit
      _
    %544 = vsyncpa [#allocation3], 1
    %s545 = scalar_lea.sflag [#allocation3], 1
    %546 = vsyncpa %s545, 1

</llo_original>
